<compile_context>
chip_gen: v7x
topology: tpu7x:2x2x1
jax: 0.10.0
libtpu: 0.0.40
codegen_flags: <defaults>
</compile_context>

<pallas_src>
import functools

import jax
import jax.numpy as jnp
from jax.experimental import pallas as pl
from jax.experimental.pallas import tpu as pltpu

LANE = 128


def _pool_attend_kernel(x_ref, w1_ref, b1_ref, w2_ref, b2_ref, e_ref,
                        scale_ref, sum_acc, max_acc, *, hw, thw, n_tiles):
    """Grid (B, n_tiles): accumulate spatial sum/max; at last tile compute attention scale."""
    t = pl.program_id(1)

    @pl.when(t == 0)
    def _init():
        sum_acc[...] = jnp.zeros_like(sum_acc)
        max_acc[...] = jnp.full_like(max_acc, -jnp.inf)

    x = x_ref[...].astype(jnp.float32)                 # (C, thw); accumulate in f32
    if n_tiles * thw != hw:
        # Zero padding exists only in the final tile: neutral for the sum, mask it for the max.
        lane = jax.lax.broadcasted_iota(jnp.int32, x.shape, 1) + t * thw
        x_for_max = jnp.where(lane < hw, x, -jnp.inf)
    else:
        x_for_max = x

    sum_acc[...] += jnp.sum(x, axis=-1, keepdims=True)
    max_acc[...] = jnp.maximum(max_acc[...], jnp.max(x_for_max, axis=-1, keepdims=True))

    @pl.when(t == n_tiles - 1)
    def _finalize():
        # Runs once per batch element, off the per-tile hot path (overlaps next batch's DMAs).
        s = sum_acc[...] * (1.0 / hw) + max_acc[...]                         # (C, 1)
        h = jnp.dot(w1_ref[...], s, preferred_element_type=jnp.float32) + b1_ref[...]
        h = jnp.maximum(h, 0.0)                                              # BN folded + ReLU
        logits = jnp.dot(w2_ref[...], h, preferred_element_type=jnp.float32) + b2_ref[...]
        m = jnp.max(logits, axis=0, keepdims=True)
        p = jnp.exp(logits - m)
        a = p / jnp.sum(p, axis=0, keepdims=True)                            # softmax over groups
        # Per-channel scale: scale[c] = a[c // (C // groups)]
        scale_ref[...] = jnp.dot(e_ref[...], a, preferred_element_type=jnp.float32)


def _apply_kernel(x_ref, scale_ref, o_ref):
    """Grid (B, n_tiles): out = x * per-channel scale (broadcast over lanes)."""
    o_ref[...] = (x_ref[...] * scale_ref[...]).astype(o_ref.dtype)


def group_att(x, w1, b1, gamma, beta, run_mean, run_var, w2, b2, *,
              groups, eps=1e-5, spatial_tile=None, tile_target_bytes=2 * 1024 * 1024):
    B, C, H, W = x.shape
    inter = w1.shape[0]
    cpg = C // groups
    hw = H * W
    itemsize = jnp.dtype(x.dtype).itemsize

    # ---- fold eval-mode BatchNorm into fc1 (parameter glue, not hot path) ----
    g = gamma / jnp.sqrt(run_var + eps)                                    # (inter,)
    w1e = (w1 * g[:, None]).astype(jnp.float32)                            # (inter, C)
    b1e = (g * (b1 - run_mean) + beta).reshape(inter, 1).astype(jnp.float32)
    w2f = w2.astype(jnp.float32)
    b2c = b2.reshape(groups, 1).astype(jnp.float32)
    # Group-expansion matrix E[c, k] = 1 if channel c belongs to group k (used once per batch).
    E = (jnp.arange(C)[:, None] // cpg == jnp.arange(groups)[None, :]).astype(jnp.float32)

    # ---- spatial tiling: lane-dense tiles, capped for VMEM (esp. v7x 64 MiB) ----
    thw_cap = max(LANE, (tile_target_bytes // (C * itemsize)) // LANE * LANE)
    if spatial_tile is not None:
        thw_cap = min(thw_cap, max(LANE, (spatial_tile // LANE) * LANE))
    hw128 = pl.cdiv(hw, LANE) * LANE
    thw = hw128 if hw128 <= thw_cap else thw_cap
    n_t = pl.cdiv(hw, thw)
    hwp = n_t * thw

    x3 = x.reshape(B, C, hw)
    if hwp != hw:
        x3 = jnp.pad(x3, ((0, 0), (0, 0), (0, hwp - hw)))                  # zeros; masked for max

    vmem_limit = int(min(64 * 1024 * 1024,
                         max(16 * 1024 * 1024, 6 * C * thw * itemsize + (4 << 20))))

    # ---- kernel A: pooled stats + attention scale, (B, C, 1) ----
    kernel_a = functools.partial(_pool_attend_kernel, hw=hw, thw=thw, n_tiles=n_t)
    scale = pl.pallas_call(
        kernel_a,
        out_shape=jax.ShapeDtypeStruct((B, C, 1), jnp.float32),
        grid_spec=pltpu.PrefetchScalarGridSpec(
            num_scalar_prefetch=0,
            grid=(B, n_t),
            in_specs=[
                pl.BlockSpec((pl.Squeezed(), C, thw), lambda b, t: (b, 0, t)),   # x tile
                pl.BlockSpec((inter, C), lambda b, t: (0, 0)),                   # fc1 (BN folded)
                pl.BlockSpec((inter, 1), lambda b, t: (0, 0)),                   # b1 (BN folded)
                pl.BlockSpec((groups, inter), lambda b, t: (0, 0)),              # fc2 weight
                pl.BlockSpec((groups, 1), lambda b, t: (0, 0)),                  # fc2 bias
                pl.BlockSpec((C, groups), lambda b, t: (0, 0)),                  # group expansion
            ],
            out_specs=pl.BlockSpec((pl.Squeezed(), C, 1), lambda b, t: (b, 0, 0)),
            scratch_shapes=[pltpu.VMEM((C, 1), jnp.float32),   # running sum
                            pltpu.VMEM((C, 1), jnp.float32)],  # running max
        ),
        compiler_params=pltpu.CompilerParams(
            dimension_semantics=("parallel", "arbitrary"),
            vmem_limit_bytes=vmem_limit),
    )(x3, w1e, b1e, w2f, b2c, E)

    # ---- kernel B: streaming apply, lane-dense output ----
    out = pl.pallas_call(
        _apply_kernel,
        out_shape=jax.ShapeDtypeStruct((B, C, hwp), x.dtype),
        grid_spec=pltpu.PrefetchScalarGridSpec(
            num_scalar_prefetch=0,
            grid=(B, n_t),
            in_specs=[
                pl.BlockSpec((pl.Squeezed(), C, thw), lambda b, t: (b, 0, t)),
                pl.BlockSpec((pl.Squeezed(), C, 1), lambda b, t: (b, 0, 0)),
            ],
            out_specs=pl.BlockSpec((pl.Squeezed(), C, thw), lambda b, t: (b, 0, t)),
        ),
        compiler_params=pltpu.CompilerParams(
            dimension_semantics=("parallel", "parallel"),
            vmem_limit_bytes=vmem_limit),
    )(x3, scale)

    if hwp != hw:
        out = out[:, :, :hw]
    return out.reshape(B, C, H, W)


def ref_group_att(x, w1, b1, gamma, beta, run_mean, run_var, w2, b2, *, groups, eps=1e-5):
    """Pure-JAX reference mirroring the PyTorch forward (eval-mode BN)."""
    B, C, H, W = x.shape
    s = jnp.mean(x, axis=(2, 3)) + jnp.max(x, axis=(2, 3))          # (B, C)
    h = s @ w1.T + b1                                               # (B, inter)
    h = (h - run_mean) / jnp.sqrt(run_var + eps) * gamma + beta
    h = jnp.maximum(h, 0.0)
    logits = h @ w2.T + b2                                          # (B, g)
    a = jax.nn.softmax(logits, axis=1)
    scale = jnp.repeat(a, C // groups, axis=1)                      # (B, C)
    return x * scale[:, :, None, None]


if __name__ == "__main__":
    B, C, H, W = 2, 16, 16, 16
    groups = 4
    reduction_factor = 4
    inter = max(C * groups // reduction_factor, 32)   # = 32

    key = jax.random.PRNGKey(0)
    kx, k1, k2, k3, k4, k5, k6, k7, k8, kx2 = jax.random.split(key, 10)

    x = jax.random.normal(kx, (B, C, H, W), dtype=jnp.float32)

    # Deterministic synthetic parameters (shapes follow the module's __init__).
    w1 = 0.1 * jax.random.normal(k1, (inter, C), dtype=jnp.float32)          # fc1 1x1 conv weight
    b1 = 0.1 * jax.random.normal(k2, (inter,), dtype=jnp.float32)            # fc1 bias
    gamma = 1.0 + 0.1 * jax.random.normal(k3, (inter,), dtype=jnp.float32)   # bn1 weight
    beta = 0.1 * jax.random.normal(k4, (inter,), dtype=jnp.float32)          # bn1 bias
    run_mean = 0.1 * jax.random.normal(k5, (inter,), dtype=jnp.float32)      # bn1 running_mean
    run_var = 0.5 + jnp.abs(jax.random.normal(k6, (inter,), dtype=jnp.float32))  # bn1 running_var
    w2 = 0.1 * jax.random.normal(k7, (groups, inter), dtype=jnp.float32)     # fc2 1x1 conv weight
    b2 = 0.1 * jax.random.normal(k8, (groups,), dtype=jnp.float32)           # fc2 bias

    params = (w1, b1, gamma, beta, run_mean, run_var, w2, b2)

    # 1) main config: HW already lane-dense, single spatial tile
    out = jax.block_until_ready(group_att(x, *params, groups=groups))
    ref = ref_group_att(x, *params, groups=groups)
    assert out.shape == (B, C, H, W)
    assert jnp.allclose(out, ref, rtol=1e-3, atol=1e-4), \
        f"max abs err {jnp.max(jnp.abs(out - ref))}"

    # 2) non-multiple-of-128 spatial size -> exercises the lane-padding + masked-max path
    x2 = jax.random.normal(kx2, (B, C, 14, 14), dtype=jnp.float32)
    out2 = jax.block_until_ready(group_att(x2, *params, groups=groups))
    ref2 = ref_group_att(x2, *params, groups=groups)
    assert jnp.allclose(out2, ref2, rtol=1e-3, atol=1e-4), \
        f"max abs err {jnp.max(jnp.abs(out2 - ref2))}"

    # 3) forced small spatial tile -> exercises the multi-tile accumulation path
    out3 = jax.block_until_ready(group_att(x, *params, groups=groups, spatial_tile=128))
    assert jnp.allclose(out3, ref, rtol=1e-3, atol=1e-4), \
        f"max abs err {jnp.max(jnp.abs(out3 - ref))}"

    print("KERNEL_OK")
</pallas_src>

<mosaic_0001>
module attributes {stable_mosaic.version = 11 : i64} {
  func.func @_pool_attend_kernel(%arg0: i32, %arg1: i32, %arg2: memref<1x16x256xf32, #tpu.memory_space<vmem>>, %arg3: memref<32x16xf32, #tpu.memory_space<vmem>>, %arg4: memref<32x1xf32, #tpu.memory_space<vmem>>, %arg5: memref<4x32xf32, #tpu.memory_space<vmem>>, %arg6: memref<4x1xf32, #tpu.memory_space<vmem>>, %arg7: memref<16x4xf32, #tpu.memory_space<vmem>>, %arg8: memref<1x16x1xf32, #tpu.memory_space<vmem>>, %arg9: memref<16x1xf32, #tpu.memory_space<vmem>>, %arg10: memref<16x1xf32, #tpu.memory_space<vmem>>) attributes {dimension_semantics = [#tpu.dimension_semantics<parallel>, #tpu.dimension_semantics<arbitrary>], iteration_bounds = array<i64: 2, 1>, scalar_prefetch = 0 : i64, scratch_operands = 2 : i64, tpu.core_type = #tpu.core_type<tc>, window_params = [{transform_indices = @transform_0, window_bounds = array<i64: 1, 16, 256>}, {pipeline_mode = #tpu.pipeline_mode<synchronous>, transform_indices = @transform_1, window_bounds = array<i64: 32, 16>}, {pipeline_mode = #tpu.pipeline_mode<synchronous>, transform_indices = @transform_2, window_bounds = array<i64: 32, 1>}, {pipeline_mode = #tpu.pipeline_mode<synchronous>, transform_indices = @transform_3, window_bounds = array<i64: 4, 32>}, {pipeline_mode = #tpu.pipeline_mode<synchronous>, transform_indices = @transform_4, window_bounds = array<i64: 4, 1>}, {pipeline_mode = #tpu.pipeline_mode<synchronous>, transform_indices = @transform_5, window_bounds = array<i64: 16, 4>}, {transform_indices = @transform_6, window_bounds = array<i64: 1, 16, 1>}]} {
    %c0_i32 = arith.constant 0 : i32
    %0 = arith.cmpi eq, %arg1, %c0_i32 : i32
    %1 = arith.extui %0 : i1 to i32
    %c0_i32_0 = arith.constant 0 : i32
    %2 = arith.cmpi ne, %1, %c0_i32_0 : i32
    scf.if %2 {
      %cst_14 = arith.constant 0.000000e+00 : f32
      %18 = vector.broadcast %cst_14 : f32 to vector<16x1xf32>
      %c0_15 = arith.constant 0 : index
      %c0_16 = arith.constant 0 : index
      %19 = vector.load %arg9[%c0_15, %c0_16] : memref<16x1xf32, #tpu.memory_space<vmem>>, vector<16x1xf32>
      tpu.vector_store %arg9[%c0_15, %c0_16], %18 {strides = array<i32>} : memref<16x1xf32, #tpu.memory_space<vmem>>, vector<16x1xf32>,
      %cst_17 = arith.constant 0xFF800000 : f32
      %20 = vector.broadcast %cst_17 : f32 to vector<16x1xf32>
      %c0_18 = arith.constant 0 : index
      %c0_19 = arith.constant 0 : index
      %21 = vector.load %arg10[%c0_18, %c0_19] : memref<16x1xf32, #tpu.memory_space<vmem>>, vector<16x1xf32>
      tpu.vector_store %arg10[%c0_18, %c0_19], %20 {strides = array<i32>} : memref<16x1xf32, #tpu.memory_space<vmem>>, vector<16x1xf32>,
    } else {
    }
    %c0 = arith.constant 0 : index
    %c0_1 = arith.constant 0 : index
    %c0_2 = arith.constant 0 : index
    %3 = vector.load %arg2[%c0, %c0_1, %c0_2] : memref<1x16x256xf32, #tpu.memory_space<vmem>>, vector<1x16x256xf32>
    %4 = vector.shape_cast %3 : vector<1x16x256xf32> to vector<16x256xf32>
    %c0_3 = arith.constant 0 : index
    %c0_4 = arith.constant 0 : index
    %5 = vector.load %arg9[%c0_3, %c0_4] : memref<16x1xf32, #tpu.memory_space<vmem>>, vector<16x1xf32>
    %cst = arith.constant dense<0.000000e+00> : vector<16xf32>
    %6 = vector.multi_reduction <add>, %4, %cst [1] : vector<16x256xf32> to vector<16xf32>
    %7 = vector.shape_cast %6 : vector<16xf32> to vector<16x1xf32>
    %8 = arith.addf %5, %7 : vector<16x1xf32>
    %c0_5 = arith.constant 0 : index
    %c0_6 = arith.constant 0 : index
    %9 = vector.load %arg9[%c0_5, %c0_6] : memref<16x1xf32, #tpu.memory_space<vmem>>, vector<16x1xf32>
    tpu.vector_store %arg9[%c0_5, %c0_6], %8 {strides = array<i32>} : memref<16x1xf32, #tpu.memory_space<vmem>>, vector<16x1xf32>,
    %c0_7 = arith.constant 0 : index
    %c0_8 = arith.constant 0 : index
    %10 = vector.load %arg10[%c0_7, %c0_8] : memref<16x1xf32, #tpu.memory_space<vmem>>, vector<16x1xf32>
    %cst_9 = arith.constant dense<0xFF800000> : vector<16xf32>
    %11 = vector.multi_reduction <maximumf>, %4, %cst_9 [1] : vector<16x256xf32> to vector<16xf32>
    %12 = vector.shape_cast %11 : vector<16xf32> to vector<16x1xf32>
    %13 = arith.maximumf %10, %12 : vector<16x1xf32>
    %c0_10 = arith.constant 0 : index
    %c0_11 = arith.constant 0 : index
    %14 = vector.load %arg10[%c0_10, %c0_11] : memref<16x1xf32, #tpu.memory_space<vmem>>, vector<16x1xf32>
    tpu.vector_store %arg10[%c0_10, %c0_11], %13 {strides = array<i32>} : memref<16x1xf32, #tpu.memory_space<vmem>>, vector<16x1xf32>,
    %c0_i32_12 = arith.constant 0 : i32
    %15 = arith.cmpi eq, %arg1, %c0_i32_12 : i32
    %16 = arith.extui %15 : i1 to i32
    %c0_i32_13 = arith.constant 0 : i32
    %17 = arith.cmpi ne, %16, %c0_i32_13 : i32
    scf.if %17 {
      %c0_14 = arith.constant 0 : index
      %c0_15 = arith.constant 0 : index
      %18 = vector.load %arg9[%c0_14, %c0_15] : memref<16x1xf32, #tpu.memory_space<vmem>>, vector<16x1xf32>
      %cst_16 = arith.constant 3.906250e-03 : f32
      %19 = vector.broadcast %cst_16 : f32 to vector<16x1xf32>
      %20 = arith.mulf %18, %19 : vector<16x1xf32>
      %c0_17 = arith.constant 0 : index
      %c0_18 = arith.constant 0 : index
      %21 = vector.load %arg10[%c0_17, %c0_18] : memref<16x1xf32, #tpu.memory_space<vmem>>, vector<16x1xf32>
      %22 = arith.addf %20, %21 : vector<16x1xf32>
      %c0_19 = arith.constant 0 : index
      %c0_20 = arith.constant 0 : index
      %23 = vector.load %arg3[%c0_19, %c0_20] : memref<32x16xf32, #tpu.memory_space<vmem>>, vector<32x16xf32>
      %cst_21 = arith.constant dense<0.000000e+00> : vector<32x1xf32>
      %24 = tpu.matmul %23, %22, %cst_21 {dimension_numbers = #tpu.dot_dimension_numbers<[1], [0], [0], [1], [0, 0, 1, 1], [], []>} : vector<32x16xf32>, vector<16x1xf32>, vector<32x1xf32> -> vector<32x1xf32>
      %c0_22 = arith.constant 0 : index
      %c0_23 = arith.constant 0 : index
      %25 = vector.load %arg4[%c0_22, %c0_23] : memref<32x1xf32, #tpu.memory_space<vmem>>, vector<32x1xf32>
      %26 = arith.addf %24, %25 : vector<32x1xf32>
      %cst_24 = arith.constant 0.000000e+00 : f32
      %27 = vector.broadcast %cst_24 : f32 to vector<32x1xf32>
      %28 = arith.maximumf %26, %27 : vector<32x1xf32>
      %c0_25 = arith.constant 0 : index
      %c0_26 = arith.constant 0 : index
      %29 = vector.load %arg5[%c0_25, %c0_26] : memref<4x32xf32, #tpu.memory_space<vmem>>, vector<4x32xf32>
      %cst_27 = arith.constant dense<0.000000e+00> : vector<4x1xf32>
      %30 = tpu.matmul %29, %28, %cst_27 {dimension_numbers = #tpu.dot_dimension_numbers<[1], [0], [0], [1], [0, 0, 1, 1], [], []>} : vector<4x32xf32>, vector<32x1xf32>, vector<4x1xf32> -> vector<4x1xf32>
      %c0_28 = arith.constant 0 : index
      %c0_29 = arith.constant 0 : index
      %31 = vector.load %arg6[%c0_28, %c0_29] : memref<4x1xf32, #tpu.memory_space<vmem>>, vector<4x1xf32>
      %32 = arith.addf %30, %31 : vector<4x1xf32>
      %cst_30 = arith.constant dense<0xFF800000> : vector<1xf32>
      %33 = vector.multi_reduction <maximumf>, %32, %cst_30 [0] : vector<4x1xf32> to vector<1xf32>
      %34 = vector.shape_cast %33 : vector<1xf32> to vector<1x1xf32>
      %35 = vector.broadcast %34 : vector<1x1xf32> to vector<4x1xf32>
      %36 = arith.subf %32, %35 : vector<4x1xf32>
      %37 = math.exp %36 : vector<4x1xf32>
      %cst_31 = arith.constant dense<0.000000e+00> : vector<1xf32>
      %38 = vector.multi_reduction <add>, %37, %cst_31 [0] : vector<4x1xf32> to vector<1xf32>
      %39 = vector.shape_cast %38 : vector<1xf32> to vector<1x1xf32>
      %40 = vector.broadcast %39 : vector<1x1xf32> to vector<4x1xf32>
      %41 = arith.divf %37, %40 : vector<4x1xf32>
      %c0_32 = arith.constant 0 : index
      %c0_33 = arith.constant 0 : index
      %42 = vector.load %arg7[%c0_32, %c0_33] : memref<16x4xf32, #tpu.memory_space<vmem>>, vector<16x4xf32>
      %cst_34 = arith.constant dense<0.000000e+00> : vector<16x1xf32>
      %43 = tpu.matmul %42, %41, %cst_34 {dimension_numbers = #tpu.dot_dimension_numbers<[1], [0], [0], [1], [0, 0, 1, 1], [], []>} : vector<16x4xf32>, vector<4x1xf32>, vector<16x1xf32> -> vector<16x1xf32>
      %c0_35 = arith.constant 0 : index
      %c0_36 = arith.constant 0 : index
      %c0_37 = arith.constant 0 : index
      %44 = vector.load %arg8[%c0_35, %c0_36, %c0_37] : memref<1x16x1xf32, #tpu.memory_space<vmem>>, vector<1x16x1xf32>
      %45 = vector.shape_cast %44 : vector<1x16x1xf32> to vector<16x1xf32>
      %46 = vector.shape_cast %43 : vector<16x1xf32> to vector<1x16x1xf32>
      tpu.vector_store %arg8[%c0_35, %c0_36, %c0_37], %46 {strides = array<i32>} : memref<1x16x1xf32, #tpu.memory_space<vmem>>, vector<1x16x1xf32>,
    } else {
    }
    return
  }
  func.func @transform_0(%arg0: i32, %arg1: i32) -> (i32, i32, i32) {
    %c0_i32 = arith.constant 0 : i32
    %c0_i32_0 = arith.constant 0 : i32
    return %arg0, %c0_i32, %arg1 : i32, i32, i32
  }
  func.func @transform_1(%arg0: i32, %arg1: i32) -> (i32, i32) {
    %c0_i32 = arith.constant 0 : i32
    %c0_i32_0 = arith.constant 0 : i32
    %c0_i32_1 = arith.constant 0 : i32
    return %c0_i32, %c0_i32_0 : i32, i32
  }
  func.func @transform_2(%arg0: i32, %arg1: i32) -> (i32, i32) {
    %c0_i32 = arith.constant 0 : i32
    %c0_i32_0 = arith.constant 0 : i32
    %c0_i32_1 = arith.constant 0 : i32
    return %c0_i32, %c0_i32_0 : i32, i32
  }
  func.func @transform_3(%arg0: i32, %arg1: i32) -> (i32, i32) {
    %c0_i32 = arith.constant 0 : i32
    %c0_i32_0 = arith.constant 0 : i32
    %c0_i32_1 = arith.constant 0 : i32
    return %c0_i32, %c0_i32_0 : i32, i32
  }
  func.func @transform_4(%arg0: i32, %arg1: i32) -> (i32, i32) {
    %c0_i32 = arith.constant 0 : i32
    %c0_i32_0 = arith.constant 0 : i32
    %c0_i32_1 = arith.constant 0 : i32
    return %c0_i32, %c0_i32_0 : i32, i32
  }
  func.func @transform_5(%arg0: i32, %arg1: i32) -> (i32, i32) {
    %c0_i32 = arith.constant 0 : i32
    %c0_i32_0 = arith.constant 0 : i32
    %c0_i32_1 = arith.constant 0 : i32
    return %c0_i32, %c0_i32_0 : i32, i32
  }
  func.func @transform_6(%arg0: i32, %arg1: i32) -> (i32, i32, i32) {
    %c0_i32 = arith.constant 0 : i32
    %c0_i32_0 = arith.constant 0 : i32
    %c0_i32_1 = arith.constant 0 : i32
    return %arg0, %c0_i32, %c0_i32_0 : i32, i32, i32
  }
}

</mosaic_0001>

<llo_original>
// kernel: tpu_custom_call.1
$region0: #{tpu_custom_call.1}
  #allocation0 [shape = 'u32[]', space=smem, size = 0x4, offset = 0x4, fixed_abs, tag = 'smem constant byte address 0x4 - core index']
  #allocation1 [shape = 'u32[144,128]{1,0:T(1,128)}', space=vmem, size = 0x12000, scoped, tag = 'internal scratch']
  #allocation2 [shape = 'f32[16,1]{1,0:T(8,128)}', space=vmem, size = 0x2000, scoped, tag = 'scratch operand']
  #allocation3 [shape = 'f32[16,1]{1,0:T(8,128)}', space=vmem, size = 0x2000, scoped, tag = 'scratch operand']
  %s0 = inlined_call_operand.vmem [shape: f32[2,16,256], index: 0, kind: input, shape index: {}]
  %s1 = inlined_call_operand.vmem [shape: f32[32,16], index: 1, kind: input, shape index: {}]
  %s2 = inlined_call_operand.vmem [shape: f32[32,1], index: 2, kind: input, shape index: {}]
  %s3 = inlined_call_operand.vmem [shape: f32[4,32], index: 3, kind: input, shape index: {}]
  %s4 = inlined_call_operand.vmem [shape: f32[4,1], index: 4, kind: input, shape index: {}]
  %s5 = inlined_call_operand.vmem [shape: f32[16,4], index: 5, kind: input, shape index: {}]
  %s6 = inlined_call_operand.vmem [shape: f32[2,16,1], index: 6, kind: output, shape index: {}]
  %s7 = sld [smem:[#allocation0]]
  $region65: #{tpu_custom_call.1} parent=0
    _
  %s9 = ssub.s32 1, %s7
  %s10 = scalar_select 0, %s9, %s7
  loop: start=0, step=1, limit=4
  $region2: #{tpu_custom_call.1} parent=0 // loop_pre_header
    _
  $region3: #{tpu_custom_call.1} parent=0 // loop_header
    %s12 = sphi 0, %s16
    %p13 = scmp.ge.s32.totalorder %s12, 4
    %s19 = sphi 0, %s31
    %s20 = sphi 0, %s27
    %s21 = sphi 0, %s19
    %s22 = sphi 0, %s20
    %s23 = sphi 0, %s21
    %s24 = sphi 0, %s22
    %s36 = sphi 0, %s38
    %s39 = sphi 0, %s36
    %s40 = sphi 0, %s39
    %s56 = sphi 0, %s40
    %s60 = sphi 0, %s60
    %s62 = sphi 0, %s60
    %s63 = sphi 0, %s62
    %s77 = sphi 0, %s63
    %s81 = sphi 0, %s81
    %s83 = sphi 0, %s81
    %s84 = sphi 0, %s83
    %s98 = sphi 0, %s84
    %s102 = sphi 0, %s102
    %s104 = sphi 0, %s102
    %s105 = sphi 0, %s104
    %s119 = sphi 0, %s105
    %s123 = sphi 0, %s123
    %s125 = sphi 0, %s123
    %s126 = sphi 0, %s125
    %s140 = sphi 0, %s126
    %s144 = sphi 0, %s144
    %s146 = sphi 0, %s144
    %s147 = sphi 0, %s146
    %s161 = sphi 0, %s147
    %s167 = sphi 0, %s169
    %s170 = sphi 0, %s167
    %s171 = sphi 0, %s170
    %s187 = sphi 0, %s171
  $region4: #{tpu_custom_call.1} parent=0 // loop_header_branch
    %15 = sbr.rel (%p13) target = $region8
  $region5: #{tpu_custom_call.1} parent=0 // loop_body
    %s17 = ssub.s32 %s12, 1
    %s18 = ssub.s32 %s12, 2
    %s25 = sadd.s32 1, %s20
    %p26 = scmp.ge.s32.totalorder %s25, 1
    %s27 = scalar_select %p26, 0, %s25
    %s28 = sadd.s32 1, %s19
    %s29 = scalar_select %p26, %s28, %s19
    %p30 = scmp.ge.s32.totalorder %s29, 2
    %s31 = scalar_select %p30, 0, %s29
    %s32 = ssub.s32 %s19, %s31
    %s33 = ssub.s32 %s20, %s27
    %s34 = sor.u32 %s32, %s33
    %p35 = scmp.eq.s32.totalorder %s34, 0
    %s37 = sadd.s32 %s36, 1
    %s38 = scalar_select %p35, %s36, %s37
    %p41 = pneg %p35
    %p42 = scmp.eq.s32.totalorder %s12, 1
    %p43 = por %p41, %p42
    %p44 = scmp.ne.s32.totalorder %s36, %s39
    %p45 = scmp.eq.s32.totalorder %s12, 0
    %p46 = por %p44, %p45
    %p47 = scmp.ne.s32.totalorder %s36, %s39
    %p48 = scmp.eq.s32.totalorder %s17, 1
    %p49 = por %p47, %p48
    %p50 = scmp.ne.s32.totalorder %s39, %s40
    %p51 = scmp.eq.s32.totalorder %s17, 0
    %p52 = por %p50, %p51
    %p53 = scmp.ne.s32.totalorder %s39, %s40
    %p54 = scmp.eq.s32.totalorder %s18, 1
    %p55 = por %p53, %p54
    %p57 = scmp.ne.s32.totalorder %s40, %s56
    %p58 = scmp.eq.s32.totalorder %s18, 0
    %p59 = por %p57, %p58
    %s61 = sadd.s32 %s60, 1
    %p64 = scmp.eq.s32.totalorder %s12, 1
    %p65 = scmp.ne.s32.totalorder %s60, %s62
    %p66 = scmp.eq.s32.totalorder %s12, 0
    %p67 = por %p65, %p66
    %p68 = scmp.ne.s32.totalorder %s60, %s62
    %p69 = scmp.eq.s32.totalorder %s17, 1
    %p70 = por %p68, %p69
    %p71 = scmp.ne.s32.totalorder %s62, %s63
    %p72 = scmp.eq.s32.totalorder %s17, 0
    %p73 = por %p71, %p72
    %p74 = scmp.ne.s32.totalorder %s62, %s63
    %p75 = scmp.eq.s32.totalorder %s18, 1
    %p76 = por %p74, %p75
    %p78 = scmp.ne.s32.totalorder %s63, %s77
    %p79 = scmp.eq.s32.totalorder %s18, 0
    %p80 = por %p78, %p79
    %s82 = sadd.s32 %s81, 1
    %p85 = scmp.eq.s32.totalorder %s12, 1
    %p86 = scmp.ne.s32.totalorder %s81, %s83
    %p87 = scmp.eq.s32.totalorder %s12, 0
    %p88 = por %p86, %p87
    %p89 = scmp.ne.s32.totalorder %s81, %s83
    %p90 = scmp.eq.s32.totalorder %s17, 1
    %p91 = por %p89, %p90
    %p92 = scmp.ne.s32.totalorder %s83, %s84
    %p93 = scmp.eq.s32.totalorder %s17, 0
    %p94 = por %p92, %p93
    %p95 = scmp.ne.s32.totalorder %s83, %s84
    %p96 = scmp.eq.s32.totalorder %s18, 1
    %p97 = por %p95, %p96
    %p99 = scmp.ne.s32.totalorder %s84, %s98
    %p100 = scmp.eq.s32.totalorder %s18, 0
    %p101 = por %p99, %p100
    %s103 = sadd.s32 %s102, 1
    %p106 = scmp.eq.s32.totalorder %s12, 1
    %p107 = scmp.ne.s32.totalorder %s102, %s104
    %p108 = scmp.eq.s32.totalorder %s12, 0
    %p109 = por %p107, %p108
    %p110 = scmp.ne.s32.totalorder %s102, %s104
    %p111 = scmp.eq.s32.totalorder %s17, 1
    %p112 = por %p110, %p111
    %p113 = scmp.ne.s32.totalorder %s104, %s105
    %p114 = scmp.eq.s32.totalorder %s17, 0
    %p115 = por %p113, %p114
    %p116 = scmp.ne.s32.totalorder %s104, %s105
    %p117 = scmp.eq.s32.totalorder %s18, 1
    %p118 = por %p116, %p117
    %p120 = scmp.ne.s32.totalorder %s105, %s119
    %p121 = scmp.eq.s32.totalorder %s18, 0
    %p122 = por %p120, %p121
    %s124 = sadd.s32 %s123, 1
    %p127 = scmp.eq.s32.totalorder %s12, 1
    %p128 = scmp.ne.s32.totalorder %s123, %s125
    %p129 = scmp.eq.s32.totalorder %s12, 0
    %p130 = por %p128, %p129
    %p131 = scmp.ne.s32.totalorder %s123, %s125
    %p132 = scmp.eq.s32.totalorder %s17, 1
    %p133 = por %p131, %p132
    %p134 = scmp.ne.s32.totalorder %s125, %s126
    %p135 = scmp.eq.s32.totalorder %s17, 0
    %p136 = por %p134, %p135
    %p137 = scmp.ne.s32.totalorder %s125, %s126
    %p138 = scmp.eq.s32.totalorder %s18, 1
    %p139 = por %p137, %p138
    %p141 = scmp.ne.s32.totalorder %s126, %s140
    %p142 = scmp.eq.s32.totalorder %s18, 0
    %p143 = por %p141, %p142
    %s145 = sadd.s32 %s144, 1
    %p148 = scmp.eq.s32.totalorder %s12, 1
    %p149 = scmp.ne.s32.totalorder %s144, %s146
    %p150 = scmp.eq.s32.totalorder %s12, 0
    %p151 = por %p149, %p150
    %p152 = scmp.ne.s32.totalorder %s144, %s146
    %p153 = scmp.eq.s32.totalorder %s17, 1
    %p154 = por %p152, %p153
    %p155 = scmp.ne.s32.totalorder %s146, %s147
    %p156 = scmp.eq.s32.totalorder %s17, 0
    %p157 = por %p155, %p156
    %p158 = scmp.ne.s32.totalorder %s146, %s147
    %p159 = scmp.eq.s32.totalorder %s18, 1
    %p160 = por %p158, %p159
    %p162 = scmp.ne.s32.totalorder %s147, %s161
    %p163 = scmp.eq.s32.totalorder %s18, 0
    %p164 = por %p162, %p163
    %s165 = ssub.s32 %s19, %s31
    %p166 = scmp.eq.s32.totalorder %s165, 0
    %s168 = sadd.s32 %s167, 1
    %s169 = scalar_select %p166, %s167, %s168
    %p172 = pneg %p166
    %p173 = scmp.eq.s32.totalorder %s12, 1
    %p174 = por %p172, %p173
    %p175 = scmp.ne.s32.totalorder %s167, %s170
    %p176 = scmp.eq.s32.totalorder %s12, 0
    %p177 = por %p175, %p176
    %p178 = scmp.ne.s32.totalorder %s167, %s170
    %p179 = scmp.eq.s32.totalorder %s17, 1
    %p180 = por %p178, %p179
    %p181 = scmp.ne.s32.totalorder %s170, %s171
    %p182 = scmp.eq.s32.totalorder %s17, 0
    %p183 = por %p181, %p182
    %p184 = scmp.ne.s32.totalorder %s170, %s171
    %p185 = scmp.eq.s32.totalorder %s18, 1
    %p186 = por %p184, %p185
    %p188 = scmp.ne.s32.totalorder %s171, %s187
    %p189 = scmp.eq.s32.totalorder %s18, 0
    %p190 = por %p188, %p189
    %p191 = scmp.le.s32.totalorder 1, %s12
    %p192 = scmp.lt.s32.totalorder %s12, 3
    %p193 = pnand %p191, %p192
    %p194 = pneg %p193
    // Predicated region
    $region9: #{tpu_custom_call.1} parent=5 // pred_check
      _
    $region10: #{tpu_custom_call.1} parent=5 // pred_check_branch
      %196 = sbr.rel (%p193) target = $region12
    $region11: #{tpu_custom_call.1} parent=5 // pred_region
      %s197 = ssub.s32 %s12, 1
      // Predicated region
      $region13: #{tpu_custom_call.1} parent=11 // pred_check
        %p198 = pneg %p73
      $region14: #{tpu_custom_call.1} parent=11 // pred_check_branch
        %200 = sbr.rel (%p198) target = $region16
      $region15: #{tpu_custom_call.1} parent=11 // pred_region
        _
      $region16: #{tpu_custom_call.1} parent=11 // pred_fallthru
        _
      // Predicated region
      $region17: #{tpu_custom_call.1} parent=11 // pred_check
        %p201 = pneg %p94
      $region18: #{tpu_custom_call.1} parent=11 // pred_check_branch
        %203 = sbr.rel (%p201) target = $region20
      $region19: #{tpu_custom_call.1} parent=11 // pred_region
        _
      $region20: #{tpu_custom_call.1} parent=11 // pred_fallthru
        _
      // Predicated region
      $region21: #{tpu_custom_call.1} parent=11 // pred_check
        %p204 = pneg %p115
      $region22: #{tpu_custom_call.1} parent=11 // pred_check_branch
        %206 = sbr.rel (%p204) target = $region24
      $region23: #{tpu_custom_call.1} parent=11 // pred_region
        _
      $region24: #{tpu_custom_call.1} parent=11 // pred_fallthru
        _
      // Predicated region
      $region25: #{tpu_custom_call.1} parent=11 // pred_check
        %p207 = pneg %p136
      $region26: #{tpu_custom_call.1} parent=11 // pred_check_branch
        %209 = sbr.rel (%p207) target = $region28
      $region27: #{tpu_custom_call.1} parent=11 // pred_region
        _
      $region28: #{tpu_custom_call.1} parent=11 // pred_fallthru
        _
      // Predicated region
      $region29: #{tpu_custom_call.1} parent=11 // pred_check
        %p210 = pneg %p157
      $region30: #{tpu_custom_call.1} parent=11 // pred_check_branch
        %212 = sbr.rel (%p210) target = $region32
      $region31: #{tpu_custom_call.1} parent=11 // pred_region
        _
      $region32: #{tpu_custom_call.1} parent=11 // pred_fallthru
        _
    $region12: #{tpu_custom_call.1} parent=5 // pred_fallthru
      _
    %p213 = scmp.lt.s32.totalorder %s12, 2
    // Predicated region
    $region33: #{tpu_custom_call.1} parent=5 // pred_check
      %p214 = pneg %p213
    $region34: #{tpu_custom_call.1} parent=5 // pred_check_branch
      %216 = sbr.rel (%p214) target = $region36
    $region35: #{tpu_custom_call.1} parent=5 // pred_region
      // Predicated region
      $region37: #{tpu_custom_call.1} parent=35 // pred_check
        %p217 = pneg %p46
      $region38: #{tpu_custom_call.1} parent=35 // pred_check_branch
        %219 = sbr.rel (%p217) target = $region40
      $region39: #{tpu_custom_call.1} parent=35 // pred_region
        %s220 = smul.u32 2, %s20
        %p221 = scmp.lt.s32.totalorder %s19, 1
        %s222 = scalar_select %p221, %s19, 1
        %p223 = scmp.lt.s32.totalorder %s220, 1
        %s224 = scalar_select %p223, %s220, 1
        %s225 = smul.addr %s222, 4
        %s226 = sadd.s32 %s224, %s225
        %s227 = smul.addr %s226, 8
        %s228 = scalar_lea.vmem %s0, %s227
        %s229 = smul.u32 2, %s20
      $region40: #{tpu_custom_call.1} parent=35 // pred_fallthru
        _
    $region36: #{tpu_custom_call.1} parent=5 // pred_fallthru
      _
    %p230 = scmp.le.s32.totalorder 1, %s12
    %p231 = scmp.lt.s32.totalorder %s12, 3
    %p232 = pnand %p230, %p231
    %p233 = pneg %p232
    // Predicated region
    $region41: #{tpu_custom_call.1} parent=5 // pred_check
      _
    $region42: #{tpu_custom_call.1} parent=5 // pred_check_branch
      %235 = sbr.rel (%p232) target = $region44
    $region43: #{tpu_custom_call.1} parent=5 // pred_region
      %s236 = ssub.s32 %s12, 1
      %s237 = smul.u32 2, %s22
      %p238 = scmp.lt.s32.totalorder %s21, 1
      %s239 = scalar_select %p238, %s21, 1
      %p240 = scmp.lt.s32.totalorder %s237, 1
      %s241 = scalar_select %p240, %s237, 1
      %s242 = smul.addr %s239, 4
      %s243 = sadd.s32 %s241, %s242
      %s244 = smul.addr %s243, 8
      %s245 = scalar_lea.vmem %s0, %s244
      %p246 = pneg %p52
      %p247 = pneg %p49
      %p248 = pneg %p73
      %p249 = pneg %p70
      %p250 = pneg %p94
      %p251 = pneg %p91
      %p252 = pneg %p115
      %p253 = pneg %p112
      %p254 = pneg %p136
      %p255 = pneg %p133
      %p256 = pneg %p157
      %p257 = pneg %p154
      %p258 = pneg %p183
      %p259 = pneg %p180
      %p260 = scmp.lt.s32.totalorder %s21, 1
      %s261 = scalar_select %p260, %s21, 1
      %s262 = smul.addr %s261, 2
      %s263 = smul.addr %s262, 8
      %s264 = scalar_lea.vmem %s6, %s263
      %s265 = smul.u32 2, %s22
      %p266 = scmp.lt.s32.totalorder %s21, 1
      %s267 = scalar_select %p266, %s21, 1
      %p268 = scmp.lt.s32.totalorder %s265, 1
      %s269 = scalar_select %p268, %s265, 1
      %s270 = smul.addr %s267, 4
      %s271 = sadd.s32 %s269, %s270
      %s272 = smul.addr %s271, 8
      %s273 = scalar_lea.vmem %s0, %s272
      %s274 = smul.u32 2, %s22
      %p275 = scmp.lt.s32.totalorder %s21, 1
      %s276 = scalar_select %p275, %s21, 1
      %s277 = smul.addr %s276, 2
      %s278 = smul.addr %s277, 8
      %s279 = scalar_lea.vmem %s6, %s278
      %p280 = scmp.eq.s32.totalorder %s22, 0
      // Predicated region
      $region45: #{tpu_custom_call.1} parent=43 // pred_check
        %p281 = pneg %p280
      $region46: #{tpu_custom_call.1} parent=43 // pred_check_branch
        %283 = sbr.rel (%p281) target = $region48
      $region47: #{tpu_custom_call.1} parent=43 // pred_region
        %vm284 = vcmask 7168
        %285 = vst.msk [vmem:[#allocation2] sm:$0xff] %vm284, 0.0
        %286 = vst.msk [vmem:[#allocation2 + $0x8] sm:$0xff] %vm284, 0.0
        %287 = vst.msk [vmem:[#allocation3] sm:$0xff] %vm284, -inf
        %288 = vst.msk [vmem:[#allocation3 + $0x8] sm:$0xff] %vm284, -inf
      $region48: #{tpu_custom_call.1} parent=43 // pred_fallthru
        _
      %v289 = vld [vmem:[%s273] sm:$0xff]
      %v290 = vld [vmem:[%s273 + $0x8] sm:$0xff]
      %v291 = vld [vmem:[%s273 + $0x10] sm:$0xff]
      %v292 = vld [vmem:[%s273 + $0x18] sm:$0xff]
      %v293 = vld [vmem:[#allocation2] sm:$0xff]
      %v294 = vld [vmem:[#allocation2 + $0x8] sm:$0xff]
      %v295 = vadd.f32 %v289, %v290
      %296 = vadd.xlane.f32.xlu0 %v295
      %v297 = vpop.xlane.xlu0 %296
      %v298 = vadd.f32 %v291, %v292
      %299 = vadd.xlane.f32.xlu0 %v298
      %v300 = vpop.xlane.xlu0 %299
      %v301 = vadd.f32 %v293, %v297
      %v302 = vadd.f32 %v294, %v300
      %vm303 = vcmask 7168
      %304 = vst.msk [vmem:[#allocation2] sm:$0xff] %vm303, %v301
      %305 = vst.msk [vmem:[#allocation2 + $0x8] sm:$0xff] %vm303, %v302
      %v306 = vld [vmem:[#allocation3] sm:$0xff]
      %v307 = vld [vmem:[#allocation3 + $0x8] sm:$0xff]
      %v308 = vmax.f32 %v289, %v290
      %309 = vmax.xlane.f32.xlu0 %v308
      %v310 = vpop.xlane.xlu0 %309
      %v311 = vmax.f32 %v291, %v292
      %312 = vmax.xlane.f32.xlu0 %v311
      %v313 = vpop.xlane.xlu0 %312
      %v314 = vmax.f32 %v306, %v310
      %v315 = vmax.f32 %v307, %v313
      %316 = vst.msk [vmem:[#allocation3] sm:$0xff] %vm303, %v314
      %317 = vst.msk [vmem:[#allocation3 + $0x8] sm:$0xff] %vm303, %v315
      // Predicated region
      $region49: #{tpu_custom_call.1} parent=43 // pred_check
        %p318 = pneg %p280
      $region50: #{tpu_custom_call.1} parent=43 // pred_check_branch
        %320 = sbr.rel (%p318) target = $region52
      $region51: #{tpu_custom_call.1} parent=43 // pred_region
        %v321 = vld [vmem:[#allocation2] sm:$0xff]
        %v322 = vld [vmem:[#allocation2 + $0x8] sm:$0xff]
        %v323 = vmul.f32 %v321, 0.00390625
        %v324 = vmul.f32 %v322, 0.00390625
        %v325 = vld [vmem:[#allocation3] sm:$0xff]
        %v326 = vld [vmem:[#allocation3 + $0x8] sm:$0xff]
        %v327 = vadd.f32 %v323, %v325
        %v328 = vadd.f32 %v324, %v326
        %v329 = vld [vmem:[%s1] sm:$0xff]
        %v330 = vld [vmem:[%s1 + $0x8] sm:$0xff]
        %v331 = vld [vmem:[%s1 + $0x10] sm:$0xff]
        %v332 = vld [vmem:[%s1 + $0x18] sm:$0xff]
        %v333 = vld [vmem:[%s2] sm:$0xff]
        %v334 = vld [vmem:[%s2 + $0x8] sm:$0xff]
        %v335 = vld [vmem:[%s2 + $0x10] sm:$0xff]
        %v336 = vld [vmem:[%s2 + $0x18] sm:$0xff]
        %vm337 = vcmask 130048
        %v339 = vsel %vm337, %v329, 0
        %v342 = vsel %vm337, %v330, 0
        %v345 = vsel %vm337, %v331, 0
        %v348 = vsel %vm337, %v332, 0
        %350 = vmatprep.subr.mxu0 0.0
        %351 = vmatpush1.msra.mxu0 %v327
        %352 = vmatprep.subr.mxu0 0.0
        %353 = vmatpush1.msra.mxu0 %v328
        %354 = vmatprep.subr.mxu0 0.0
        %355 = vmatpush1.msra.mxu0 0.0
        %356 = vmatprep.subr.mxu0 0.0
        %357 = vmatpush1.msra.mxu0 0.0
        %358 = vmatprep.subr.mxu0 0.0
        %359 = vmatpush1.msra.mxu0 0.0
        %360 = vmatprep.subr.mxu0 0.0
        %361 = vmatpush1.msra.mxu0 0.0
        %362 = vmatprep.subr.mxu0 0.0
        %363 = vmatpush1.msra.mxu0 0.0
        %364 = vmatprep.subr.mxu0 0.0
        %365 = vmatpush1.msra.mxu0 0.0
        %366 = vmatprep.subr.mxu0 0.0
        %367 = vmatpush1.msra.mxu0 0.0
        %368 = vmatprep.subr.mxu0 0.0
        %369 = vmatpush1.msra.mxu0 0.0
        %370 = vmatprep.subr.mxu0 0.0
        %371 = vmatpush1.msra.mxu0 0.0
        %372 = vmatprep.subr.mxu0 0.0
        %373 = vmatpush1.msra.mxu0 0.0
        %374 = vmatprep.subr.mxu0 0.0
        %375 = vmatpush1.msra.mxu0 0.0
        %376 = vmatprep.subr.mxu0 0.0
        %377 = vmatpush1.msra.mxu0 0.0
        %378 = vmatprep.subr.mxu0 0.0
        %379 = vmatpush1.msra.mxu0 0.0
        %380 = vmatprep.subr.mxu0 0.0
        %381 = vmatpush1.msra.mxu0 0.0
        %382 = vmatprep.subr.mxu0 0.0
        %383 = vmatpush1.msra.mxu0 0.0
        %384 = vmatprep.subr.mxu0 0.0
        %385 = vmatpush1.msra.mxu0 0.0
        %386 = vmatprep.subr.mxu0 0.0
        %387 = vmatpush1.msra.mxu0 0.0
        %388 = vmatprep.subr.mxu0 0.0
        %389 = vmatpush1.msra.mxu0 0.0
        %390 = vmatprep.subr.mxu0 0.0
        %391 = vmatpush1.msra.mxu0 0.0
        %392 = vmatprep.subr.mxu0 0.0
        %393 = vmatpush1.msra.mxu0 0.0
        %394 = vmatprep.subr.mxu0 0.0
        %395 = vmatpush1.msra.mxu0 0.0
        %396 = vmatprep.subr.mxu0 0.0
        %397 = vmatpush1.msra.mxu0 0.0
        %398 = vmatprep.subr.mxu0 0.0
        %399 = vmatpush1.msra.mxu0 0.0
        %400 = vmatprep.subr.mxu0 0.0
        %401 = vmatpush1.msra.mxu0 0.0
        %402 = vmatprep.subr.mxu0 0.0
        %403 = vmatpush1.msra.mxu0 0.0
        %404 = vmatprep.subr.mxu0 0.0
        %405 = vmatpush1.msra.mxu0 0.0
        %406 = vmatprep.subr.mxu0 0.0
        %407 = vmatpush1.msra.mxu0 0.0
        %408 = vmatprep.subr.mxu0 0.0
        %409 = vmatpush1.msra.mxu0 0.0
        %410 = vmatprep.subr.mxu0 0.0
        %411 = vmatpush1.msra.mxu0 0.0
        %412 = vmatprep.subr.mxu0 0.0
        %413 = vmatpush1.msra.mxu0 0.0
        %414 = vmatprep.mubr.f32.mxu0 0.0
        %415 = vmatmul.mubr.f32.gmra.mrb[0].mxu0 %v339
        %v416 = vpop.f32.mrb[0].mxu0
        %v417 = vadd.f32 %v333, %v416
        %v418 = vpop.f32.mrb[0].mxu0
        %419 = vmatprep.mubr.f32.mxu0 0.0
        %420 = vmatmul.mubr.f32.gmra.mrb[0].mxu0 %v342
        %v421 = vpop.f32.mrb[0].mxu0
        %v422 = vadd.f32 %v334, %v421
        %v423 = vpop.f32.mrb[0].mxu0
        %424 = vmatprep.mubr.f32.mxu0 0.0
        %425 = vmatmul.mubr.f32.gmra.mrb[0].mxu0 %v345
        %v426 = vpop.f32.mrb[0].mxu0
        %v427 = vadd.f32 %v335, %v426
        %v428 = vpop.f32.mrb[0].mxu0
        %429 = vmatprep.mubr.f32.mxu0 0.0
        %430 = vmatmul.mubr.f32.gmra.mrb[0].mxu0 %v348
        %v431 = vpop.f32.mrb[0].mxu0
        %v432 = vadd.f32 %v336, %v431
        %v433 = vpop.f32.mrb[0].mxu0
        %434 = vdwg.mxu0
        %v435 = vmax.f32 %v417, 0.0
        %v436 = vmax.f32 %v422, 0.0
        %v437 = vmax.f32 %v427, 0.0
        %v438 = vmax.f32 %v432, 0.0
        %v439 = vld [vmem:[%s3] sm:$0xf]
        %v440 = vld [vmem:[%s4] sm:$0xf]
        %vm441 = vcmask 261120
        %v443 = vsel %vm441, %v439, 0
        %445 = vmatprep.subr.mxu0 0.0
        %446 = vmatpush1.msra.mxu0 %v435
        %447 = vmatprep.subr.mxu0 0.0
        %448 = vmatpush1.msra.mxu0 %v436
        %449 = vmatprep.subr.mxu0 0.0
        %450 = vmatpush1.msra.mxu0 %v437
        %451 = vmatprep.subr.mxu0 0.0
        %452 = vmatpush1.msra.mxu0 %v438
        %453 = vmatprep.subr.mxu0 0.0
        %454 = vmatpush1.msra.mxu0 0.0
        %455 = vmatprep.subr.mxu0 0.0
        %456 = vmatpush1.msra.mxu0 0.0
        %457 = vmatprep.subr.mxu0 0.0
        %458 = vmatpush1.msra.mxu0 0.0
        %459 = vmatprep.subr.mxu0 0.0
        %460 = vmatpush1.msra.mxu0 0.0
        %461 = vmatprep.subr.mxu0 0.0
        %462 = vmatpush1.msra.mxu0 0.0
        %463 = vmatprep.subr.mxu0 0.0
        %464 = vmatpush1.msra.mxu0 0.0
        %465 = vmatprep.subr.mxu0 0.0
        %466 = vmatpush1.msra.mxu0 0.0
        %467 = vmatprep.subr.mxu0 0.0
        %468 = vmatpush1.msra.mxu0 0.0
        %469 = vmatprep.subr.mxu0 0.0
        %470 = vmatpush1.msra.mxu0 0.0
        %471 = vmatprep.subr.mxu0 0.0
        %472 = vmatpush1.msra.mxu0 0.0
        %473 = vmatprep.subr.mxu0 0.0
        %474 = vmatpush1.msra.mxu0 0.0
        %475 = vmatprep.subr.mxu0 0.0
        %476 = vmatpush1.msra.mxu0 0.0
        %477 = vmatprep.subr.mxu0 0.0
        %478 = vmatpush1.msra.mxu0 0.0
        %479 = vmatprep.subr.mxu0 0.0
        %480 = vmatpush1.msra.mxu0 0.0
        %481 = vmatprep.subr.mxu0 0.0
        %482 = vmatpush1.msra.mxu0 0.0
        %483 = vmatprep.subr.mxu0 0.0
        %484 = vmatpush1.msra.mxu0 0.0
        %485 = vmatprep.subr.mxu0 0.0
        %486 = vmatpush1.msra.mxu0 0.0
        %487 = vmatprep.subr.mxu0 0.0
        %488 = vmatpush1.msra.mxu0 0.0
        %489 = vmatprep.subr.mxu0 0.0
        %490 = vmatpush1.msra.mxu0 0.0
        %491 = vmatprep.subr.mxu0 0.0
        %492 = vmatpush1.msra.mxu0 0.0
        %493 = vmatprep.subr.mxu0 0.0
        %494 = vmatpush1.msra.mxu0 0.0
        %495 = vmatprep.subr.mxu0 0.0
        %496 = vmatpush1.msra.mxu0 0.0
        %497 = vmatprep.subr.mxu0 0.0
        %498 = vmatpush1.msra.mxu0 0.0
        %499 = vmatprep.subr.mxu0 0.0
        %500 = vmatpush1.msra.mxu0 0.0
        %501 = vmatprep.subr.mxu0 0.0
        %502 = vmatpush1.msra.mxu0 0.0
        %503 = vmatprep.subr.mxu0 0.0
        %504 = vmatpush1.msra.mxu0 0.0
        %505 = vmatprep.subr.mxu0 0.0
        %506 = vmatpush1.msra.mxu0 0.0
        %507 = vmatprep.subr.mxu0 0.0
        %508 = vmatpush1.msra.mxu0 0.0
        %509 = vmatprep.mubr.f32.mxu0 0.0
        %510 = vmatmul.mubr.f32.gmra.mrb[0].mxu0 %v443
        %v511 = vpop.f32.mrb[0].mxu0
        %v512 = vadd.f32 %v440, %v511
        %v513 = vpop.f32.mrb[0].mxu0
        %514 = vdwg.mxu0
        %vm515 = vcmask 3072
        %v516 = vsel %vm515, %v512, -inf
        %v517 = vrot.slane %v516, 4
        %v518 = vmax.f32 %v516, %v517
        %v519 = vrot.slane %v518, 2
        %v520 = vmax.f32 %v518, %v519
        %v521 = vrot.slane %v520, 1
        %v522 = vmax.f32 %v520, %v521
        %v523 = vsub.f32 %v512, %v522
        %v524 = vmul.f32 %v523, 1.442695
        %v525 = vpow.pop %v524
        %v526 = vsel %vm515, %v525, 0.0
        %v527 = vrot.slane %v526, 4
        %v528 = vadd.f32 %v526, %v527
        %v529 = vrot.slane %v528, 2
        %v530 = vadd.f32 %v528, %v529
        %v531 = vrot.slane %v530, 1
        %v532 = vadd.f32 %v530, %v531
        %v533 = vrcp.pop %v532
        %v534 = vmul.f32 %v525, %v533
        %v535 = vld [vmem:[%s5] sm:$0xff]
        %v536 = vld [vmem:[%s5 + $0x8] sm:$0xff]
        %vm537 = vcmask 31744
        %v539 = vsel %vm537, %v535, 0
        %v542 = vsel %vm537, %v536, 0
        %vm544 = vcmask 1043456
        %v546 = vsel %vm544, %v534, 0
        %548 = vmatprep.subr.mxu0 0.0
        %549 = vmatpush1.msra.mxu0 %v546
        %550 = vmatprep.subr.mxu0 0.0
        %551 = vmatpush1.msra.mxu0 0.0
        %552 = vmatprep.subr.mxu0 0.0
        %553 = vmatpush1.msra.mxu0 0.0
        %554 = vmatprep.subr.mxu0 0.0
        %555 = vmatpush1.msra.mxu0 0.0
        %556 = vmatprep.subr.mxu0 0.0
        %557 = vmatpush1.msra.mxu0 0.0
        %558 = vmatprep.subr.mxu0 0.0
        %559 = vmatpush1.msra.mxu0 0.0
        %560 = vmatprep.subr.mxu0 0.0
        %561 = vmatpush1.msra.mxu0 0.0
        %562 = vmatprep.subr.mxu0 0.0
        %563 = vmatpush1.msra.mxu0 0.0
        %564 = vmatprep.subr.mxu0 0.0
        %565 = vmatpush1.msra.mxu0 0.0
        %566 = vmatprep.subr.mxu0 0.0
        %567 = vmatpush1.msra.mxu0 0.0
        %568 = vmatprep.subr.mxu0 0.0
        %569 = vmatpush1.msra.mxu0 0.0
        %570 = vmatprep.subr.mxu0 0.0
        %571 = vmatpush1.msra.mxu0 0.0
        %572 = vmatprep.subr.mxu0 0.0
        %573 = vmatpush1.msra.mxu0 0.0
        %574 = vmatprep.subr.mxu0 0.0
        %575 = vmatpush1.msra.mxu0 0.0
        %576 = vmatprep.subr.mxu0 0.0
        %577 = vmatpush1.msra.mxu0 0.0
        %578 = vmatprep.subr.mxu0 0.0
        %579 = vmatpush1.msra.mxu0 0.0
        %580 = vmatprep.subr.mxu0 0.0
        %581 = vmatpush1.msra.mxu0 0.0
        %582 = vmatprep.subr.mxu0 0.0
        %583 = vmatpush1.msra.mxu0 0.0
        %584 = vmatprep.subr.mxu0 0.0
        %585 = vmatpush1.msra.mxu0 0.0
        %586 = vmatprep.subr.mxu0 0.0
        %587 = vmatpush1.msra.mxu0 0.0
        %588 = vmatprep.subr.mxu0 0.0
        %589 = vmatpush1.msra.mxu0 0.0
        %590 = vmatprep.subr.mxu0 0.0
        %591 = vmatpush1.msra.mxu0 0.0
        %592 = vmatprep.subr.mxu0 0.0
        %593 = vmatpush1.msra.mxu0 0.0
        %594 = vmatprep.subr.mxu0 0.0
        %595 = vmatpush1.msra.mxu0 0.0
        %596 = vmatprep.subr.mxu0 0.0
        %597 = vmatpush1.msra.mxu0 0.0
        %598 = vmatprep.subr.mxu0 0.0
        %599 = vmatpush1.msra.mxu0 0.0
        %600 = vmatprep.subr.mxu0 0.0
        %601 = vmatpush1.msra.mxu0 0.0
        %602 = vmatprep.subr.mxu0 0.0
        %603 = vmatpush1.msra.mxu0 0.0
        %604 = vmatprep.subr.mxu0 0.0
        %605 = vmatpush1.msra.mxu0 0.0
        %606 = vmatprep.subr.mxu0 0.0
        %607 = vmatpush1.msra.mxu0 0.0
        %608 = vmatprep.subr.mxu0 0.0
        %609 = vmatpush1.msra.mxu0 0.0
        %610 = vmatprep.subr.mxu0 0.0
        %611 = vmatpush1.msra.mxu0 0.0
        %612 = vmatprep.mubr.f32.mxu0 0.0
        %613 = vmatmul.mubr.f32.gmra.mrb[0].mxu0 %v539
        %v614 = vpop.f32.mrb[0].mxu0
        %v615 = vadd.f32 0.0, %v614
        %v616 = vpop.f32.mrb[0].mxu0
        %617 = vmatprep.mubr.f32.mxu0 0.0
        %618 = vmatmul.mubr.f32.gmra.mrb[0].mxu0 %v542
        %v619 = vpop.f32.mrb[0].mxu0
        %v620 = vadd.f32 0.0, %v619
        %v621 = vpop.f32.mrb[0].mxu0
        %622 = vdwg.mxu0
        %623 = vst.msk [vmem:[%s279] sm:$0xff] %vm303, %v615
        %624 = vst.msk [vmem:[%s279 + $0x8] sm:$0xff] %vm303, %v620
      $region52: #{tpu_custom_call.1} parent=43 // pred_fallthru
        _
      %p625 = scmp.lt.s32.totalorder %s21, 1
      %s626 = scalar_select %p625, %s21, 1
      %s627 = smul.addr %s626, 2
      %s628 = smul.addr %s627, 8
      %s629 = scalar_lea.vmem %s6, %s628
      // Predicated region
      $region53: #{tpu_custom_call.1} parent=43 // pred_check
        %p630 = pneg %p180
      $region54: #{tpu_custom_call.1} parent=43 // pred_check_branch
        %632 = sbr.rel (%p630) target = $region56
      $region55: #{tpu_custom_call.1} parent=43 // pred_region
        _
      $region56: #{tpu_custom_call.1} parent=43 // pred_fallthru
        _
    $region44: #{tpu_custom_call.1} parent=5 // pred_fallthru
      _
    %p633 = scmp.le.s32.totalorder 2, %s12
    // Predicated region
    $region57: #{tpu_custom_call.1} parent=5 // pred_check
      %p634 = pneg %p633
    $region58: #{tpu_custom_call.1} parent=5 // pred_check_branch
      %636 = sbr.rel (%p634) target = $region60
    $region59: #{tpu_custom_call.1} parent=5 // pred_region
      %s637 = ssub.s32 %s12, 2
      // Predicated region
      $region61: #{tpu_custom_call.1} parent=59 // pred_check
        %p638 = pneg %p186
      $region62: #{tpu_custom_call.1} parent=59 // pred_check_branch
        %640 = sbr.rel (%p638) target = $region64
      $region63: #{tpu_custom_call.1} parent=59 // pred_region
        %p641 = scmp.lt.s32.totalorder %s23, 1
        %s642 = scalar_select %p641, %s23, 1
        %s643 = smul.addr %s642, 2
        %s644 = smul.addr %s643, 8
        %s645 = scalar_lea.vmem %s6, %s644
      $region64: #{tpu_custom_call.1} parent=59 // pred_fallthru
        _
    $region60: #{tpu_custom_call.1} parent=5 // pred_fallthru
      _
  $region6: #{tpu_custom_call.1} parent=0 // loop_footer
    %s16 = sadd.s32 1, %s12
  $region7: #{tpu_custom_call.1} parent=0 // loop_footer_branch
    %11 = sbr.rel target = $region3
  $region8: #{tpu_custom_call.1} parent=0 // loop_exit
    _

</llo_original>
